<compile_context>
chip_gen: v7x
topology: tpu7x:2x2x1
jax: 0.10.0
libtpu: 0.0.40
codegen_flags: <defaults>
</compile_context>

<pallas_src>
import math

import jax
import jax.numpy as jnp
from jax import lax
from jax.experimental import pallas as pl
from jax.experimental.pallas import tpu as pltpu

_LANE = 128
_SUBLANE = 8
_NEG_BIG = -9.0e15  # matches the module's -9000000000000000.0


def _round_up(x: int, m: int) -> int:
    return (x + m - 1) // m * m


def _ppn_kernel(attn_ref, tgt_ref, labels_ref, feats_ref, out_ref,
                acc_sc, cnt_sc):
    """Grid = (image_dim tiles [parallel], N tiles [arbitrary/reduction])."""
    n_step = pl.program_id(1)

    # ---- first N step for this column tile: zero the accumulators ----------
    @pl.when(n_step == 0)
    def _init():
        acc_sc[...] = jnp.zeros_like(acc_sc)
        cnt_sc[...] = jnp.zeros_like(cnt_sc)

    # ---- every step: lane-dense membership mask + masked accumulation ------
    # (cls_p, 1) == (1, tile_n)  ->  (cls_p, tile_n)   (implicit broadcast)
    hit = labels_ref[...] == tgt_ref[...]
    mask = hit.astype(jnp.bfloat16)                      # single cast for MXU
    # sum_{n in tile : label[n]==c} feats[n, :]  ==  mask @ feats
    acc_sc[...] += jnp.dot(mask, feats_ref[...],
                           preferred_element_type=jnp.float32)
    cnt_sc[...] += jnp.sum(hit.astype(jnp.float32), axis=1, keepdims=True)

    # ---- last N step: normalize by counts, apply attention, emit -----------
    @pl.when(n_step == pl.num_programs(1) - 1)
    def _finalize():
        # Exact reciprocal (counts are small integers).  Empty target class
        # yields a zero prototype instead of the NaN PyTorch would produce
        # (documented deviation).
        inv_cnt = 1.0 / jnp.maximum(cnt_sc[...], 1.0)    # (cls_p, 1)
        protos = acc_sc[...] * inv_cnt                   # row-scale, tiny
        out_ref[...] = jnp.dot(attn_ref[...], protos,
                               preferred_element_type=jnp.float32
                               ).astype(out_ref.dtype)


def _vmem_limit_bytes(tile_n: int, tile_d: int, cls_p: int) -> int:
    """Conservative scoped-VMEM budget for the chosen tiling."""
    feats = 2 * tile_n * tile_d * 2                    # bf16 double buffer
    labels = 2 * _SUBLANE * tile_n * 4                 # (1, tile_n) i32, padded
    outb = 2 * cls_p * tile_d * 4                      # output double buffer
    consts = 2 * (cls_p * max(cls_p, _LANE) * 4        # attention
                  + cls_p * _LANE * 4)                 # targets column
    scratch = cls_p * tile_d * 4 + cls_p * _LANE * 4   # acc + counts
    need = feats + labels + outb + consts + scratch
    # 2x margin + 2 MiB slop; keep under v7x's 64 MiB physical VMEM.
    return int(min(max(2 * need + (2 << 20), 16 << 20), 64 << 20))


def ppn_simple_forward(image_feats, attributes, labels, target_proto_labels,
                       att_g, *, T, degree, tile_n=2048, tile_d=512):
    """JAX wrapper mirroring PPNSimple.forward."""
    assert 0 <= degree < 100, f"invalid degree : {degree}"
    thresh = math.cos(math.pi * degree / 180.0)

    cls_num, att_dim = attributes.shape
    n, image_dim = image_feats.shape
    assert att_g.shape[0] == att_dim
    assert target_proto_labels.shape[0] == cls_num  # needed for attention @ protos

    f32, bf16, i32 = jnp.float32, jnp.bfloat16, jnp.int32

    # ---- attention in plain XLA (tiny; off the streaming hot path) ---------
    # distance_func(..., 'cosine') interpreted as cosine SIMILARITY with
    # thresh = cos(degree).
    g = attributes.astype(f32) @ att_g.astype(f32)
    inv_norm = lax.rsqrt(jnp.maximum(jnp.sum(g * g, axis=-1, keepdims=True),
                                     1e-24))
    gn = g * inv_norm
    sim = gn @ gn.T
    raw = jnp.where(sim > thresh, sim, jnp.full_like(sim, _NEG_BIG)) * float(T)
    attention = jax.nn.softmax(raw, axis=1)             # exact, f32, unpadded

    # ---- lane / sublane padding (zero padding keeps every matmul exact) ----
    cls_p = _round_up(cls_num, _SUBLANE)
    image_dim_p0 = _round_up(image_dim, _LANE)
    tile_d_eff = min(_round_up(max(int(tile_d), 1), _LANE), image_dim_p0)
    image_dim_p = _round_up(image_dim, tile_d_eff)

    # Labels travel as a (1, N) lane-dense row, so a tiled N block needs its
    # last dim to be a multiple of 128.
    tile_n_eff = _round_up(min(max(int(tile_n), 1), _round_up(n, _LANE)), _LANE)
    n_pad = _round_up(n, tile_n_eff)
    grid = (image_dim_p // tile_d_eff, n_pad // tile_n_eff)

    lab_pad = jnp.iinfo(i32).min       # sentinel: never matches any target
    tgt_pad = jnp.iinfo(i32).min + 1   # sentinel: never matches any label

    attn_p = jnp.zeros((cls_p, cls_p), f32).at[:cls_num, :cls_num].set(attention)
    feats_p = jnp.zeros((n_pad, image_dim_p), bf16).at[:n, :image_dim].set(
        image_feats.astype(bf16))
    labels_row = jnp.full((1, n_pad), lab_pad, i32).at[0, :n].set(
        labels.reshape(n).astype(i32))
    tgt_col = jnp.full((cls_p, 1), tgt_pad, i32).at[:cls_num, 0].set(
        target_proto_labels.reshape(cls_num).astype(i32))

    grid_spec = pltpu.PrefetchScalarGridSpec(
        num_scalar_prefetch=0,
        grid=grid,
        in_specs=[
            pl.BlockSpec((cls_p, cls_p), lambda d, i: (0, 0)),          # attention
            pl.BlockSpec((cls_p, 1), lambda d, i: (0, 0)),              # targets col
            pl.BlockSpec((1, tile_n_eff), lambda d, i: (0, i)),         # labels row
            pl.BlockSpec((tile_n_eff, tile_d_eff), lambda d, i: (i, d)),  # feats
        ],
        out_specs=pl.BlockSpec((cls_p, tile_d_eff), lambda d, i: (0, d)),
        scratch_shapes=[
            pltpu.VMEM((cls_p, tile_d_eff), f32),   # per-class feature sums
            pltpu.VMEM((cls_p, 1), f32),            # per-class counts
        ],
    )

    out_p = pl.pallas_call(
        _ppn_kernel,
        out_shape=jax.ShapeDtypeStruct((cls_p, image_dim_p), f32),
        grid_spec=grid_spec,
        compiler_params=pltpu.CompilerParams(
            # image_dim tiles split across TensorCores; N is the reduction.
            dimension_semantics=("parallel", "arbitrary"),
            vmem_limit_bytes=_vmem_limit_bytes(tile_n_eff, tile_d_eff, cls_p),
        ),
    )(attn_p, tgt_col, labels_row, feats_p)

    return out_p[:cls_num, :image_dim]


def ppn_simple_reference(image_feats, attributes, labels, target_proto_labels,
                         att_g, *, T, degree):
    """Pure-JAX f32 reference for correctness checking."""
    thresh = math.cos(math.pi * degree / 180.0)
    g = attributes @ att_g
    gn = g / jnp.maximum(jnp.linalg.norm(g, axis=-1, keepdims=True), 1e-12)
    sim = gn @ gn.T
    raw = jnp.where(sim > thresh, sim, jnp.full_like(sim, _NEG_BIG)) * T
    attention = jax.nn.softmax(raw, axis=1)
    mask = (target_proto_labels[:, None] == labels[None, :]).astype(jnp.float32)
    protos = (mask @ image_feats) / jnp.sum(mask, axis=1, keepdims=True)
    return attention @ protos


if __name__ == "__main__":
    # Small shapes consistent with the module's forward; chosen so that the
    # multi-step N accumulation (3 tiles), the parallel image_dim axis
    # (2 column tiles), and both cls / image_dim / N padding paths run.
    cls_num, att_dim, att_hC = 10, 16, 32
    N, image_dim = 300, 160
    T, degree = 10.0, 60  # thresh = cos(60 deg) = 0.5

    key = jax.random.PRNGKey(0)
    k_attg, k_attr, k_feat = jax.random.split(key, 3)

    # Deterministic kaiming_uniform_(a=sqrt(5))-style init.
    bound = 1.0 / math.sqrt(att_hC)
    att_g = jax.random.uniform(k_attg, (att_dim, att_hC), jnp.float32,
                               minval=-bound, maxval=bound)

    attributes = jax.random.normal(k_attr, (cls_num, att_dim), jnp.float32)
    image_feats = jax.random.normal(k_feat, (N, image_dim), jnp.float32)
    # Every target class appears at least once (no empty-class mean).
    labels = jnp.arange(N, dtype=jnp.int32) % cls_num
    target_proto_labels = jnp.arange(cls_num, dtype=jnp.int32)

    out = ppn_simple_forward(image_feats, attributes, labels,
                             target_proto_labels, att_g,
                             T=T, degree=degree, tile_n=128, tile_d=128)
    out = jax.block_until_ready(out)

    ref = ppn_simple_reference(image_feats, attributes, labels,
                               target_proto_labels, att_g, T=T, degree=degree)
    assert out.shape == (cls_num, image_dim)
    # Tolerance accounts for bf16 MXU operands (image_feats / mask).
    assert jnp.allclose(out, ref, atol=2e-2, rtol=2e-2), "mismatch vs reference"

    print("KERNEL_OK")
</pallas_src>

<mosaic_0001>
module attributes {stable_mosaic.version = 11 : i64} {
  func.func @_ppn_kernel(%arg0: i32, %arg1: i32, %arg2: memref<16x16xf32, #tpu.memory_space<vmem>>, %arg3: memref<16x1xi32, #tpu.memory_space<vmem>>, %arg4: memref<1x128xi32, #tpu.memory_space<vmem>>, %arg5: memref<128x128xbf16, #tpu.memory_space<vmem>>, %arg6: memref<16x128xf32, #tpu.memory_space<vmem>>, %arg7: memref<16x128xf32, #tpu.memory_space<vmem>>, %arg8: memref<16x1xf32, #tpu.memory_space<vmem>>) attributes {dimension_semantics = [#tpu.dimension_semantics<parallel>, #tpu.dimension_semantics<arbitrary>], iteration_bounds = array<i64: 2, 3>, scalar_prefetch = 0 : i64, scratch_operands = 2 : i64, tpu.core_type = #tpu.core_type<tc>, window_params = [{pipeline_mode = #tpu.pipeline_mode<synchronous>, transform_indices = @transform_0, window_bounds = array<i64: 16, 16>}, {pipeline_mode = #tpu.pipeline_mode<synchronous>, transform_indices = @transform_1, window_bounds = array<i64: 16, 1>}, {transform_indices = @transform_2, window_bounds = array<i64: 1, 128>}, {transform_indices = @transform_3, window_bounds = array<i64: 128, 128>}, {transform_indices = @transform_4, window_bounds = array<i64: 16, 128>}]} {
    %c0_i32 = arith.constant 0 : i32
    %0 = arith.cmpi eq, %arg1, %c0_i32 : i32
    %1 = arith.extui %0 : i1 to i32
    %c0_i32_0 = arith.constant 0 : i32
    %2 = arith.cmpi ne, %1, %c0_i32_0 : i32
    scf.if %2 {
      %cst_16 = arith.constant 0.000000e+00 : f32
      %26 = vector.broadcast %cst_16 : f32 to vector<16x128xf32>
      %c0_17 = arith.constant 0 : index
      %c0_18 = arith.constant 0 : index
      %27 = vector.load %arg7[%c0_17, %c0_18] : memref<16x128xf32, #tpu.memory_space<vmem>>, vector<16x128xf32>
      tpu.vector_store %arg7[%c0_17, %c0_18], %26 {strides = array<i32>} : memref<16x128xf32, #tpu.memory_space<vmem>>, vector<16x128xf32>,
      %cst_19 = arith.constant 0.000000e+00 : f32
      %28 = vector.broadcast %cst_19 : f32 to vector<16x1xf32>
      %c0_20 = arith.constant 0 : index
      %c0_21 = arith.constant 0 : index
      %29 = vector.load %arg8[%c0_20, %c0_21] : memref<16x1xf32, #tpu.memory_space<vmem>>, vector<16x1xf32>
      tpu.vector_store %arg8[%c0_20, %c0_21], %28 {strides = array<i32>} : memref<16x1xf32, #tpu.memory_space<vmem>>, vector<16x1xf32>,
    } else {
    }
    %c0 = arith.constant 0 : index
    %c0_1 = arith.constant 0 : index
    %3 = vector.load %arg4[%c0, %c0_1] : memref<1x128xi32, #tpu.memory_space<vmem>>, vector<1x128xi32>
    %c0_2 = arith.constant 0 : index
    %c0_3 = arith.constant 0 : index
    %4 = vector.load %arg3[%c0_2, %c0_3] : memref<16x1xi32, #tpu.memory_space<vmem>>, vector<16x1xi32>
    %5 = vector.broadcast %3 : vector<1x128xi32> to vector<16x128xi32>
    %6 = vector.broadcast %4 : vector<16x1xi32> to vector<16x128xi32>
    %7 = arith.cmpi eq, %5, %6 : vector<16x128xi32>
    %8 = arith.extui %7 : vector<16x128xi1> to vector<16x128xi32>
    %9 = arith.sitofp %8 : vector<16x128xi32> to vector<16x128xf32>
    %10 = arith.truncf %9 : vector<16x128xf32> to vector<16x128xbf16>
    %c0_4 = arith.constant 0 : index
    %c0_5 = arith.constant 0 : index
    %11 = vector.load %arg7[%c0_4, %c0_5] : memref<16x128xf32, #tpu.memory_space<vmem>>, vector<16x128xf32>
    %c0_6 = arith.constant 0 : index
    %c0_7 = arith.constant 0 : index
    %12 = vector.load %arg5[%c0_6, %c0_7] : memref<128x128xbf16, #tpu.memory_space<vmem>>, vector<128x128xbf16>
    %cst = arith.constant dense<0.000000e+00> : vector<16x128xf32>
    %13 = tpu.matmul %10, %12, %cst {dimension_numbers = #tpu.dot_dimension_numbers<[1], [0], [0], [1], [0, 0, 1, 1], [], []>} : vector<16x128xbf16>, vector<128x128xbf16>, vector<16x128xf32> -> vector<16x128xf32>
    %14 = arith.addf %11, %13 : vector<16x128xf32>
    %c0_8 = arith.constant 0 : index
    %c0_9 = arith.constant 0 : index
    %15 = vector.load %arg7[%c0_8, %c0_9] : memref<16x128xf32, #tpu.memory_space<vmem>>, vector<16x128xf32>
    tpu.vector_store %arg7[%c0_8, %c0_9], %14 {strides = array<i32>} : memref<16x128xf32, #tpu.memory_space<vmem>>, vector<16x128xf32>,
    %c0_10 = arith.constant 0 : index
    %c0_11 = arith.constant 0 : index
    %16 = vector.load %arg8[%c0_10, %c0_11] : memref<16x1xf32, #tpu.memory_space<vmem>>, vector<16x1xf32>
    %17 = arith.extui %7 : vector<16x128xi1> to vector<16x128xi32>
    %18 = arith.sitofp %17 : vector<16x128xi32> to vector<16x128xf32>
    %cst_12 = arith.constant dense<0.000000e+00> : vector<16xf32>
    %19 = vector.multi_reduction <add>, %18, %cst_12 [1] : vector<16x128xf32> to vector<16xf32>
    %20 = vector.shape_cast %19 : vector<16xf32> to vector<16x1xf32>
    %21 = arith.addf %16, %20 : vector<16x1xf32>
    %c0_13 = arith.constant 0 : index
    %c0_14 = arith.constant 0 : index
    %22 = vector.load %arg8[%c0_13, %c0_14] : memref<16x1xf32, #tpu.memory_space<vmem>>, vector<16x1xf32>
    tpu.vector_store %arg8[%c0_13, %c0_14], %21 {strides = array<i32>} : memref<16x1xf32, #tpu.memory_space<vmem>>, vector<16x1xf32>,
    %c2_i32 = arith.constant 2 : i32
    %23 = arith.cmpi eq, %arg1, %c2_i32 : i32
    %24 = arith.extui %23 : i1 to i32
    %c0_i32_15 = arith.constant 0 : i32
    %25 = arith.cmpi ne, %24, %c0_i32_15 : i32
    scf.if %25 {
      %c0_16 = arith.constant 0 : index
      %c0_17 = arith.constant 0 : index
      %26 = vector.load %arg8[%c0_16, %c0_17] : memref<16x1xf32, #tpu.memory_space<vmem>>, vector<16x1xf32>
      %cst_18 = arith.constant 1.000000e+00 : f32
      %27 = vector.broadcast %cst_18 : f32 to vector<16x1xf32>
      %28 = arith.maximumf %26, %27 : vector<16x1xf32>
      %cst_19 = arith.constant 1.000000e+00 : f32
      %29 = vector.broadcast %cst_19 : f32 to vector<16x1xf32>
      %30 = arith.divf %29, %28 : vector<16x1xf32>
      %c0_20 = arith.constant 0 : index
      %c0_21 = arith.constant 0 : index
      %31 = vector.load %arg7[%c0_20, %c0_21] : memref<16x128xf32, #tpu.memory_space<vmem>>, vector<16x128xf32>
      %32 = vector.broadcast %30 : vector<16x1xf32> to vector<16x128xf32>
      %33 = arith.mulf %31, %32 : vector<16x128xf32>
      %c0_22 = arith.constant 0 : index
      %c0_23 = arith.constant 0 : index
      %34 = vector.load %arg2[%c0_22, %c0_23] : memref<16x16xf32, #tpu.memory_space<vmem>>, vector<16x16xf32>
      %cst_24 = arith.constant dense<0.000000e+00> : vector<16x128xf32>
      %35 = tpu.matmul %34, %33, %cst_24 {dimension_numbers = #tpu.dot_dimension_numbers<[1], [0], [0], [1], [0, 0, 1, 1], [], []>} : vector<16x16xf32>, vector<16x128xf32>, vector<16x128xf32> -> vector<16x128xf32>
      %c0_25 = arith.constant 0 : index
      %c0_26 = arith.constant 0 : index
      %36 = vector.load %arg6[%c0_25, %c0_26] : memref<16x128xf32, #tpu.memory_space<vmem>>, vector<16x128xf32>
      tpu.vector_store %arg6[%c0_25, %c0_26], %35 {strides = array<i32>} : memref<16x128xf32, #tpu.memory_space<vmem>>, vector<16x128xf32>,
    } else {
    }
    return
  }
  func.func @transform_0(%arg0: i32, %arg1: i32) -> (i32, i32) {
    %c0_i32 = arith.constant 0 : i32
    %c0_i32_0 = arith.constant 0 : i32
    %c0_i32_1 = arith.constant 0 : i32
    return %c0_i32, %c0_i32_0 : i32, i32
  }
  func.func @transform_1(%arg0: i32, %arg1: i32) -> (i32, i32) {
    %c0_i32 = arith.constant 0 : i32
    %c0_i32_0 = arith.constant 0 : i32
    %c0_i32_1 = arith.constant 0 : i32
    return %c0_i32, %c0_i32_0 : i32, i32
  }
  func.func @transform_2(%arg0: i32, %arg1: i32) -> (i32, i32) {
    %c0_i32 = arith.constant 0 : i32
    %c0_i32_0 = arith.constant 0 : i32
    return %c0_i32, %arg1 : i32, i32
  }
  func.func @transform_3(%arg0: i32, %arg1: i32) -> (i32, i32) {
    %c0_i32 = arith.constant 0 : i32
    return %arg1, %arg0 : i32, i32
  }
  func.func @transform_4(%arg0: i32, %arg1: i32) -> (i32, i32) {
    %c0_i32 = arith.constant 0 : i32
    %c0_i32_0 = arith.constant 0 : i32
    return %c0_i32, %arg0 : i32, i32
  }
}

</mosaic_0001>

<llo_original>
// kernel: tpu_custom_call.1
$region0: #{tpu_custom_call.1}
  #allocation0 [shape = 'u32[]', space=smem, size = 0x4, offset = 0x4, fixed_abs, tag = 'smem constant byte address 0x4 - core index']
  #allocation1 [shape = 'u32[144,128]{1,0:T(1,128)}', space=vmem, size = 0x12000, scoped, tag = 'internal scratch']
  #allocation2 [shape = 'f32[16,128]{1,0:T(8,128)}', space=vmem, size = 0x2000, scoped, tag = 'scratch operand']
  #allocation3 [shape = 'f32[16,1]{1,0:T(8,128)}', space=vmem, size = 0x2000, scoped, tag = 'scratch operand']
  %s0 = inlined_call_operand.vmem [shape: f32[16,16], index: 0, kind: input, shape index: {}]
  %s1 = inlined_call_operand.vmem [shape: s32[16,1], index: 1, kind: input, shape index: {}]
  %s2 = inlined_call_operand.vmem [shape: s32[1,384], index: 2, kind: input, shape index: {}]
  %s3 = inlined_call_operand.hbm [shape: bf16[384,256], index: 3, kind: input, shape index: {}]
  %s4 = inlined_call_operand.hbm [shape: f32[16,256], index: 4, kind: output, shape index: {}]
  %s5 = sld [smem:[#allocation0]]
  $region61: #{tpu_custom_call.1} parent=0
    _
  %s7 = ssub.s32 1, %s5
  %s8 = scalar_select 0, %s7, %s5
  $region1: #{tpu_custom_call.1} parent=0
    #allocation4 [shape = 'u8[65536]{0}', space=vmem, size = 0x10000, scoped, tag = 'input window, operand 3']
    #allocation5 [shape = 's32[2]{0}', space=sflag, size = 0x8, scoped, tag = 'scoped memory for tpu_custom_call.1']
    #allocation6 [shape = 's32[2]{0}', space=sflag, size = 0x8, scoped, tag = 'scoped memory for tpu_custom_call.1']
    #allocation7 [shape = 'u8[16384]{0}', space=vmem, size = 0x4000, scoped, tag = 'output window, operand 0']
    %9 = vsyncpa [#allocation5], 0
    %s10 = scalar_lea.sflag [#allocation5], 1
    %11 = vsyncpa %s10, 0
    %12 = vsyncpa [#allocation6], 0
    %s13 = scalar_lea.sflag [#allocation6], 1
    %14 = vsyncpa %s13, 0
    loop: start=0, step=1, limit=8
    $region2: #{tpu_custom_call.1} parent=1 // loop_pre_header
      _
    $region3: #{tpu_custom_call.1} parent=1 // loop_header
      %s16 = sphi 0, %s20
      %p17 = scmp.ge.s32.totalorder %s16, 8
      %s23 = sphi 0, %s35
      %s24 = sphi 0, %s31
      %s25 = sphi 0, %s23
      %s26 = sphi 0, %s24
      %s27 = sphi 0, %s25
      %s28 = sphi 0, %s26
      %s36 = sphi 0, %s36
      %s38 = sphi 0, %s36
      %s39 = sphi 0, %s38
      %s53 = sphi 0, %s39
      %s57 = sphi 0, %s57
      %s59 = sphi 0, %s57
      %s60 = sphi 0, %s59
      %s74 = sphi 0, %s60
      %s80 = sphi 0, %s82
      %s83 = sphi 0, %s80
      %s84 = sphi 0, %s83
      %s100 = sphi 0, %s84
      %s108 = sphi 0, %s110
      %s111 = sphi 0, %s108
      %s112 = sphi 0, %s111
      %s128 = sphi 0, %s112
      %s134 = sphi 0, %s136
      %s137 = sphi 0, %s134
      %s138 = sphi 0, %s137
      %s154 = sphi 0, %s138
    $region4: #{tpu_custom_call.1} parent=1 // loop_header_branch
      %19 = sbr.rel (%p17) target = $region8
    $region5: #{tpu_custom_call.1} parent=1 // loop_body
      %s21 = ssub.s32 %s16, 1
      %s22 = ssub.s32 %s16, 2
      %s29 = sadd.s32 1, %s24
      %p30 = scmp.ge.s32.totalorder %s29, 3
      %s31 = scalar_select %p30, 0, %s29
      %s32 = sadd.s32 1, %s23
      %s33 = scalar_select %p30, %s32, %s23
      %p34 = scmp.ge.s32.totalorder %s33, 2
      %s35 = scalar_select %p34, 0, %s33
      %s37 = sadd.s32 %s36, 1
      %p40 = scmp.eq.s32.totalorder %s16, 5
      %p41 = scmp.ne.s32.totalorder %s36, %s38
      %p42 = scmp.eq.s32.totalorder %s16, 0
      %p43 = por %p41, %p42
      %p44 = scmp.ne.s32.totalorder %s36, %s38
      %p45 = scmp.eq.s32.totalorder %s21, 5
      %p46 = por %p44, %p45
      %p47 = scmp.ne.s32.totalorder %s38, %s39
      %p48 = scmp.eq.s32.totalorder %s21, 0
      %p49 = por %p47, %p48
      %p50 = scmp.ne.s32.totalorder %s38, %s39
      %p51 = scmp.eq.s32.totalorder %s22, 5
      %p52 = por %p50, %p51
      %p54 = scmp.ne.s32.totalorder %s39, %s53
      %p55 = scmp.eq.s32.totalorder %s22, 0
      %p56 = por %p54, %p55
      %s58 = sadd.s32 %s57, 1
      %p61 = scmp.eq.s32.totalorder %s16, 5
      %p62 = scmp.ne.s32.totalorder %s57, %s59
      %p63 = scmp.eq.s32.totalorder %s16, 0
      %p64 = por %p62, %p63
      %p65 = scmp.ne.s32.totalorder %s57, %s59
      %p66 = scmp.eq.s32.totalorder %s21, 5
      %p67 = por %p65, %p66
      %p68 = scmp.ne.s32.totalorder %s59, %s60
      %p69 = scmp.eq.s32.totalorder %s21, 0
      %p70 = por %p68, %p69
      %p71 = scmp.ne.s32.totalorder %s59, %s60
      %p72 = scmp.eq.s32.totalorder %s22, 5
      %p73 = por %p71, %p72
      %p75 = scmp.ne.s32.totalorder %s60, %s74
      %p76 = scmp.eq.s32.totalorder %s22, 0
      %p77 = por %p75, %p76
      %s78 = ssub.s32 %s24, %s31
      %p79 = scmp.eq.s32.totalorder %s78, 0
      %s81 = sadd.s32 %s80, 1
      %s82 = scalar_select %p79, %s80, %s81
      %p85 = pneg %p79
      %p86 = scmp.eq.s32.totalorder %s16, 5
      %p87 = por %p85, %p86
      %p88 = scmp.ne.s32.totalorder %s80, %s83
      %p89 = scmp.eq.s32.totalorder %s16, 0
      %p90 = por %p88, %p89
      %p91 = scmp.ne.s32.totalorder %s80, %s83
      %p92 = scmp.eq.s32.totalorder %s21, 5
      %p93 = por %p91, %p92
      %p94 = scmp.ne.s32.totalorder %s83, %s84
      %p95 = scmp.eq.s32.totalorder %s21, 0
      %p96 = por %p94, %p95
      %p97 = scmp.ne.s32.totalorder %s83, %s84
      %p98 = scmp.eq.s32.totalorder %s22, 5
      %p99 = por %p97, %p98
      %p101 = scmp.ne.s32.totalorder %s84, %s100
      %p102 = scmp.eq.s32.totalorder %s22, 0
      %p103 = por %p101, %p102
      %s104 = ssub.s32 %s24, %s31
      %s105 = ssub.s32 %s23, %s35
      %s106 = sor.u32 %s104, %s105
      %p107 = scmp.eq.s32.totalorder %s106, 0
      %s109 = sadd.s32 %s108, 1
      %s110 = scalar_select %p107, %s108, %s109
      %p113 = pneg %p107
      %p114 = scmp.eq.s32.totalorder %s16, 5
      %p115 = por %p113, %p114
      %p116 = scmp.ne.s32.totalorder %s108, %s111
      %p117 = scmp.eq.s32.totalorder %s16, 0
      %p118 = por %p116, %p117
      %p119 = scmp.ne.s32.totalorder %s108, %s111
      %p120 = scmp.eq.s32.totalorder %s21, 5
      %p121 = por %p119, %p120
      %p122 = scmp.ne.s32.totalorder %s111, %s112
      %p123 = scmp.eq.s32.totalorder %s21, 0
      %p124 = por %p122, %p123
      %p125 = scmp.ne.s32.totalorder %s111, %s112
      %p126 = scmp.eq.s32.totalorder %s22, 5
      %p127 = por %p125, %p126
      %p129 = scmp.ne.s32.totalorder %s112, %s128
      %p130 = scmp.eq.s32.totalorder %s22, 0
      %p131 = por %p129, %p130
      %s132 = ssub.s32 %s23, %s35
      %p133 = scmp.eq.s32.totalorder %s132, 0
      %s135 = sadd.s32 %s134, 1
      %s136 = scalar_select %p133, %s134, %s135
      %p139 = pneg %p133
      %p140 = scmp.eq.s32.totalorder %s16, 5
      %p141 = por %p139, %p140
      %p142 = scmp.ne.s32.totalorder %s134, %s137
      %p143 = scmp.eq.s32.totalorder %s16, 0
      %p144 = por %p142, %p143
      %p145 = scmp.ne.s32.totalorder %s134, %s137
      %p146 = scmp.eq.s32.totalorder %s21, 5
      %p147 = por %p145, %p146
      %p148 = scmp.ne.s32.totalorder %s137, %s138
      %p149 = scmp.eq.s32.totalorder %s21, 0
      %p150 = por %p148, %p149
      %p151 = scmp.ne.s32.totalorder %s137, %s138
      %p152 = scmp.eq.s32.totalorder %s22, 5
      %p153 = por %p151, %p152
      %p155 = scmp.ne.s32.totalorder %s138, %s154
      %p156 = scmp.eq.s32.totalorder %s22, 0
      %p157 = por %p155, %p156
      %p158 = scmp.le.s32.totalorder 1, %s16
      %p159 = scmp.lt.s32.totalorder %s16, 7
      %p160 = pnand %p158, %p159
      %p161 = pneg %p160
      // Predicated region
      $region9: #{tpu_custom_call.1} parent=5 // pred_check
        _
      $region10: #{tpu_custom_call.1} parent=5 // pred_check_branch
        %163 = sbr.rel (%p160) target = $region12
      $region11: #{tpu_custom_call.1} parent=5 // pred_region
        %s164 = ssub.s32 %s16, 1
        // Predicated region
        $region13: #{tpu_custom_call.1} parent=11 // pred_check
          %p165 = pneg %p49
        $region14: #{tpu_custom_call.1} parent=11 // pred_check_branch
          %167 = sbr.rel (%p165) target = $region16
        $region15: #{tpu_custom_call.1} parent=11 // pred_region
          _
        $region16: #{tpu_custom_call.1} parent=11 // pred_fallthru
          _
        // Predicated region
        $region17: #{tpu_custom_call.1} parent=11 // pred_check
          %p168 = pneg %p70
        $region18: #{tpu_custom_call.1} parent=11 // pred_check_branch
          %170 = sbr.rel (%p168) target = $region20
        $region19: #{tpu_custom_call.1} parent=11 // pred_region
          _
        $region20: #{tpu_custom_call.1} parent=11 // pred_fallthru
          _
      $region12: #{tpu_custom_call.1} parent=5 // pred_fallthru
        _
      %p171 = scmp.lt.s32.totalorder %s16, 6
      // Predicated region
      $region21: #{tpu_custom_call.1} parent=5 // pred_check
        %p172 = pneg %p171
      $region22: #{tpu_custom_call.1} parent=5 // pred_check_branch
        %174 = sbr.rel (%p172) target = $region24
      $region23: #{tpu_custom_call.1} parent=5 // pred_region
        // Predicated region
        $region25: #{tpu_custom_call.1} parent=23 // pred_check
          %p175 = pneg %p90
        $region26: #{tpu_custom_call.1} parent=23 // pred_check_branch
          %177 = sbr.rel (%p175) target = $region28
        $region27: #{tpu_custom_call.1} parent=23 // pred_region
          %p178 = scmp.lt.s32.totalorder %s24, 2
          %s179 = scalar_select %p178, %s24, 2
          %s180 = scalar_lea.vmem %s2, %s179
        $region28: #{tpu_custom_call.1} parent=23 // pred_fallthru
          _
        // Predicated region
        $region29: #{tpu_custom_call.1} parent=23 // pred_check
          %p181 = pneg %p118
        $region30: #{tpu_custom_call.1} parent=23 // pred_check_branch
          %183 = sbr.rel (%p181) target = $region32
        $region31: #{tpu_custom_call.1} parent=23 // pred_region
          %s184 = sand.u32 %s108, 1
          %s185 = scalar_lea.sflag [#allocation5], %s184
          %s186 = sand.u32 %s108, 1
          %s187 = smul.addr %s186, 64
          %s188 = scalar_lea.vmem [#allocation4], %s187
          %s189 = smul.u32 16, %s24
          %s191 = ssub.s32 1024, 1024
          %192 = vsyncadd %s185, %s191
          %s193 = smul.addr %s189, 2
          %s194 = sadd.s32 %s23, %s193
          %s195 = smul.addr %s194, 64
          %s196 = scalar_lea.hbm %s3, %s195
          %s197 = sshll.u32 %s188, 4
          %s198 = int_to_ptr.vmem [resolvable:$true] %s197
          %203 = dma.hbm_to_vmem [thread:$0]  %s196, 1024, %s198, %s185, 128, 64, 4
        $region32: #{tpu_custom_call.1} parent=23 // pred_fallthru
          _
      $region24: #{tpu_custom_call.1} parent=5 // pred_fallthru
        _
      %p204 = scmp.le.s32.totalorder 1, %s16
      %p205 = scmp.lt.s32.totalorder %s16, 7
      %p206 = pnand %p204, %p205
      %p207 = pneg %p206
      // Predicated region
      $region33: #{tpu_custom_call.1} parent=5 // pred_check
        _
      $region34: #{tpu_custom_call.1} parent=5 // pred_check_branch
        %209 = sbr.rel (%p206) target = $region36
      $region35: #{tpu_custom_call.1} parent=5 // pred_region
        %s210 = ssub.s32 %s16, 1
        %s211 = sand.u32 %s111, 1
        %s212 = scalar_lea.sflag [#allocation5], %s211
        %s213 = sand.u32 %s111, 1
        %s214 = smul.addr %s213, 64
        %s215 = scalar_lea.vmem [#allocation4], %s214
        // Predicated region
        $region37: #{tpu_custom_call.1} parent=35 // pred_check
          %p216 = pneg %p124
        $region38: #{tpu_custom_call.1} parent=35 // pred_check_branch
          %218 = sbr.rel (%p216) target = $region40
        $region39: #{tpu_custom_call.1} parent=35 // pred_region
          %219 = dma.done %s212, 1024
        $region40: #{tpu_custom_call.1} parent=35 // pred_fallthru
          _
        %p220 = pneg %p49
        %p221 = pneg %p46
        %p222 = pneg %p70
        %p223 = pneg %p67
        %p224 = scmp.lt.s32.totalorder %s26, 2
        %s225 = scalar_select %p224, %s26, 2
        %s226 = scalar_lea.vmem %s2, %s225
        %p227 = pneg %p96
        %p228 = pneg %p93
        %s229 = sand.u32 %s111, 1
        %s230 = scalar_lea.sflag [#allocation5], %s229
        %s231 = sand.u32 %s111, 1
        %s232 = smul.addr %s231, 64
        %s233 = scalar_lea.vmem [#allocation4], %s232
        %p234 = pneg %p124
        %p235 = pneg %p121
        %p236 = pneg %p150
        %p237 = pneg %p147
        %s238 = sand.u32 %s137, 1
        %s239 = scalar_lea.sflag [#allocation6], %s238
        %s240 = sand.u32 %s137, 1
        %s241 = smul.addr %s240, 16
        %s242 = scalar_lea.vmem [#allocation7], %s241
        %p243 = scmp.lt.s32.totalorder %s26, 2
        %s244 = scalar_select %p243, %s26, 2
        %s245 = scalar_lea.vmem %s2, %s244
        %s246 = smul.u32 16, %s26
        %p248 = scmp.eq.s32.totalorder %s26, 0
        // Predicated region
        $region41: #{tpu_custom_call.1} parent=35 // pred_check
          %p249 = pneg %p248
        $region42: #{tpu_custom_call.1} parent=35 // pred_check_branch
          %251 = sbr.rel (%p249) target = $region44
        $region43: #{tpu_custom_call.1} parent=35 // pred_region
          %252 = vst [vmem:[#allocation2] sm:$0xff] 0.0
          %253 = vst [vmem:[#allocation2 + $0x8] sm:$0xff] 0.0
          %vm254 = vcmask 7168
          %255 = vst.msk [vmem:[#allocation3] sm:$0xff] %vm254, 0.0
          %256 = vst.msk [vmem:[#allocation3 + $0x8] sm:$0xff] %vm254, 0.0
        $region44: #{tpu_custom_call.1} parent=35 // pred_fallthru
          _
        %v257 = vld [vmem:[%s245] sm:$0x1]
        %v258 = vld [vmem:[%s1] sm:$0xff]
        %v259 = vld [vmem:[%s1 + $0x8] sm:$0xff]
        %v260 = vlaneseq
        %v261 = vshrl.u32 %v260, 7
        %v262 = vsub.s32 0, %v261
        %v263 = vrot.slane %v257, %v262
        %264 = vset.pattern.permute.xlu0 0
        %265 = vperm.xlu0 %264, %v258
        %v266 = vpop.permute.xlu0 %265
        %267 = vset.pattern.permute.xlu0 0
        %268 = vperm.xlu0 %267, %v259
        %v269 = vpop.permute.xlu0 %268
        %vm270 = vcmp.eq.s32.totalorder %v263, %v266
        %vm271 = vcmp.eq.s32.totalorder %v263, %v269
        %v272 = vsel %vm270, 1, 0
        %v273 = vsel %vm271, 1, 0
        %v274 = vcvt.s32.f32 %v272
        %v275 = vcvt.s32.f32 %v273
        %v276 = vpack.c.bf16 %v275, %v274
        %v277 = vld [vmem:[#allocation2] sm:$0xff]
        %v278 = vld [vmem:[#allocation2 + $0x8] sm:$0xff]
        %v279 = vld [vmem:[%s215] sm:$0xf]
        %v280 = vld [vmem:[%s215 + $0x4] sm:$0xf]
        %v281 = vld [vmem:[%s215 + $0x8] sm:$0xf]
        %v282 = vld [vmem:[%s215 + $0xc] sm:$0xf]
        %v283 = vld [vmem:[%s215 + $0x10] sm:$0xf]
        %v284 = vld [vmem:[%s215 + $0x14] sm:$0xf]
        %v285 = vld [vmem:[%s215 + $0x18] sm:$0xf]
        %v286 = vld [vmem:[%s215 + $0x1c] sm:$0xf]
        %v287 = vld [vmem:[%s215 + $0x20] sm:$0xf]
        %v288 = vld [vmem:[%s215 + $0x24] sm:$0xf]
        %v289 = vld [vmem:[%s215 + $0x28] sm:$0xf]
        %v290 = vld [vmem:[%s215 + $0x2c] sm:$0xf]
        %v291 = vld [vmem:[%s215 + $0x30] sm:$0xf]
        %v292 = vld [vmem:[%s215 + $0x34] sm:$0xf]
        %v293 = vld [vmem:[%s215 + $0x38] sm:$0xf]
        %v294 = vld [vmem:[%s215 + $0x3c] sm:$0xf]
        %v311 = vunpack.c.l.b16 %v279
        %v312 = vunpack.c.l.b16 %v280
        %v313 = vunpack.c.l.b16 %v281
        %v314 = vunpack.c.l.b16 %v282
        %v315 = vunpack.c.l.b16 %v283
        %v316 = vunpack.c.l.b16 %v284
        %v317 = vunpack.c.l.b16 %v285
        %v318 = vunpack.c.l.b16 %v286
        %v319 = vunpack.c.l.b16 %v287
        %v320 = vunpack.c.l.b16 %v288
        %v321 = vunpack.c.l.b16 %v289
        %v322 = vunpack.c.l.b16 %v290
        %v323 = vunpack.c.l.b16 %v291
        %v324 = vunpack.c.l.b16 %v292
        %v325 = vunpack.c.l.b16 %v293
        %v326 = vunpack.c.l.b16 %v294
        %v327 = vpack.c.b16 %v312, %v311
        %v328 = vpack.c.b16 %v314, %v313
        %v329 = vpack.c.b16 %v316, %v315
        %v330 = vpack.c.b16 %v318, %v317
        %v331 = vpack.c.b16 %v320, %v319
        %v332 = vpack.c.b16 %v322, %v321
        %v333 = vpack.c.b16 %v324, %v323
        %v334 = vpack.c.b16 %v326, %v325
        %343 = vmatprep.subr.bf16.mxu0 0
        %344 = vmatpush1.bf16.msra.mxu0 %v327
        %345 = vmatprep.subr.bf16.mxu0 0
        %346 = vmatpush1.bf16.msra.mxu0 %v328
        %347 = vmatprep.subr.bf16.mxu0 0
        %348 = vmatpush1.bf16.msra.mxu0 %v329
        %349 = vmatprep.subr.bf16.mxu0 0
        %350 = vmatpush1.bf16.msra.mxu0 %v330
        %351 = vmatprep.subr.bf16.mxu0 0
        %352 = vmatpush1.bf16.msra.mxu0 %v331
        %353 = vmatprep.subr.bf16.mxu0 0
        %354 = vmatpush1.bf16.msra.mxu0 %v332
        %355 = vmatprep.subr.bf16.mxu0 0
        %356 = vmatpush1.bf16.msra.mxu0 %v333
        %357 = vmatprep.subr.bf16.mxu0 0
        %358 = vmatpush1.bf16.msra.mxu0 %v334
        %359 = vmatprep.subr.bf16.mxu0 0
        %360 = vmatpush1.bf16.msra.mxu0 0
        %361 = vmatprep.subr.bf16.mxu0 0
        %362 = vmatpush1.bf16.msra.mxu0 0
        %363 = vmatprep.subr.bf16.mxu0 0
        %364 = vmatpush1.bf16.msra.mxu0 0
        %365 = vmatprep.subr.bf16.mxu0 0
        %366 = vmatpush1.bf16.msra.mxu0 0
        %367 = vmatprep.subr.bf16.mxu0 0
        %368 = vmatpush1.bf16.msra.mxu0 0
        %369 = vmatprep.subr.bf16.mxu0 0
        %370 = vmatpush1.bf16.msra.mxu0 0
        %371 = vmatprep.subr.bf16.mxu0 0
        %372 = vmatpush1.bf16.msra.mxu0 0
        %373 = vmatprep.subr.bf16.mxu0 0
        %374 = vmatpush1.bf16.msra.mxu0 0
        %375 = vmatprep.mubr.bf16.mxu0 0
        %376 = vmatmul.mubr.bf16.gmra.mrb[0].mxu0 %v276
        %v377 = vpop.f32.mrb[0].mxu0
        %v378 = vadd.f32 0.0, %v377
        %v379 = vpop.f32.mrb[0].mxu0
        %v380 = vpop.f32.mrb[0].mxu0
        %v381 = vadd.f32 0.0, %v380
        %v382 = vpop.f32.mrb[0].mxu0
        %383 = vdwg.mxu0
        %v384 = vadd.f32 %v277, %v378
        %v385 = vadd.f32 %v278, %v381
        %386 = vst [vmem:[#allocation2] sm:$0xff] %v384
        %387 = vst [vmem:[#allocation2 + $0x8] sm:$0xff] %v385
        %v388 = vld [vmem:[#allocation3] sm:$0xff]
        %v389 = vld [vmem:[#allocation3 + $0x8] sm:$0xff]
        %390 = vadd.xlane.f32.xlu0 %v274
        %v391 = vpop.xlane.xlu0 %390
        %392 = vadd.xlane.f32.xlu0 %v275
        %v393 = vpop.xlane.xlu0 %392
        %v394 = vadd.f32 %v388, %v391
        %v395 = vadd.f32 %v389, %v393
        %vm396 = vcmask 7168
        %397 = vst.msk [vmem:[#allocation3] sm:$0xff] %vm396, %v394
        %398 = vst.msk [vmem:[#allocation3 + $0x8] sm:$0xff] %vm396, %v395
        %p399 = scmp.eq.s32.totalorder %s26, 2
        // Predicated region
        $region45: #{tpu_custom_call.1} parent=35 // pred_check
          %p400 = pneg %p399
        $region46: #{tpu_custom_call.1} parent=35 // pred_check_branch
          %402 = sbr.rel (%p400) target = $region48
        $region47: #{tpu_custom_call.1} parent=35 // pred_region
          %v403 = vld [vmem:[#allocation3] sm:$0xff]
          %v404 = vld [vmem:[#allocation3 + $0x8] sm:$0xff]
          %v405 = vmax.f32 %v403, 1.0
          %v406 = vmax.f32 %v404, 1.0
          %v407 = vrcp.pop %v405
          %v408 = vmul.f32 1.0, %v407
          %v409 = vrcp.pop %v406
          %v410 = vmul.f32 1.0, %v409
          %v411 = vld [vmem:[#allocation2] sm:$0xff]
          %v412 = vld [vmem:[#allocation2 + $0x8] sm:$0xff]
          %414 = vset.pattern.permute.xlu0 0
          %415 = vperm.xlu0 %414, %v408
          %v416 = vpop.permute.xlu0 %415
          %419 = vset.pattern.permute.xlu0 0
          %420 = vperm.xlu0 %419, %v410
          %v421 = vpop.permute.xlu0 %420
          %v423 = vmul.f32 %v411, %v416
          %v424 = vmul.f32 %v412, %v421
          %v425 = vld [vmem:[%s0] sm:$0xff]
          %v426 = vld [vmem:[%s0 + $0x8] sm:$0xff]
          %vm427 = vcmask 130048
          %v429 = vsel %vm427, %v425, 0
          %v432 = vsel %vm427, %v426, 0
          %434 = vmatprep.subr.mxu0 0.0
          %435 = vmatpush1.msra.mxu0 %v423
          %436 = vmatprep.subr.mxu0 0.0
          %437 = vmatpush1.msra.mxu0 %v424
          %438 = vmatprep.subr.mxu0 0.0
          %439 = vmatpush1.msra.mxu0 0.0
          %440 = vmatprep.subr.mxu0 0.0
          %441 = vmatpush1.msra.mxu0 0.0
          %442 = vmatprep.subr.mxu0 0.0
          %443 = vmatpush1.msra.mxu0 0.0
          %444 = vmatprep.subr.mxu0 0.0
          %445 = vmatpush1.msra.mxu0 0.0
          %446 = vmatprep.subr.mxu0 0.0
          %447 = vmatpush1.msra.mxu0 0.0
          %448 = vmatprep.subr.mxu0 0.0
          %449 = vmatpush1.msra.mxu0 0.0
          %450 = vmatprep.subr.mxu0 0.0
          %451 = vmatpush1.msra.mxu0 0.0
          %452 = vmatprep.subr.mxu0 0.0
          %453 = vmatpush1.msra.mxu0 0.0
          %454 = vmatprep.subr.mxu0 0.0
          %455 = vmatpush1.msra.mxu0 0.0
          %456 = vmatprep.subr.mxu0 0.0
          %457 = vmatpush1.msra.mxu0 0.0
          %458 = vmatprep.subr.mxu0 0.0
          %459 = vmatpush1.msra.mxu0 0.0
          %460 = vmatprep.subr.mxu0 0.0
          %461 = vmatpush1.msra.mxu0 0.0
          %462 = vmatprep.subr.mxu0 0.0
          %463 = vmatpush1.msra.mxu0 0.0
          %464 = vmatprep.subr.mxu0 0.0
          %465 = vmatpush1.msra.mxu0 0.0
          %466 = vmatprep.subr.mxu0 0.0
          %467 = vmatpush1.msra.mxu0 0.0
          %468 = vmatprep.subr.mxu0 0.0
          %469 = vmatpush1.msra.mxu0 0.0
          %470 = vmatprep.subr.mxu0 0.0
          %471 = vmatpush1.msra.mxu0 0.0
          %472 = vmatprep.subr.mxu0 0.0
          %473 = vmatpush1.msra.mxu0 0.0
          %474 = vmatprep.subr.mxu0 0.0
          %475 = vmatpush1.msra.mxu0 0.0
          %476 = vmatprep.subr.mxu0 0.0
          %477 = vmatpush1.msra.mxu0 0.0
          %478 = vmatprep.subr.mxu0 0.0
          %479 = vmatpush1.msra.mxu0 0.0
          %480 = vmatprep.subr.mxu0 0.0
          %481 = vmatpush1.msra.mxu0 0.0
          %482 = vmatprep.subr.mxu0 0.0
          %483 = vmatpush1.msra.mxu0 0.0
          %484 = vmatprep.subr.mxu0 0.0
          %485 = vmatpush1.msra.mxu0 0.0
          %486 = vmatprep.subr.mxu0 0.0
          %487 = vmatpush1.msra.mxu0 0.0
          %488 = vmatprep.subr.mxu0 0.0
          %489 = vmatpush1.msra.mxu0 0.0
          %490 = vmatprep.subr.mxu0 0.0
          %491 = vmatpush1.msra.mxu0 0.0
          %492 = vmatprep.subr.mxu0 0.0
          %493 = vmatpush1.msra.mxu0 0.0
          %494 = vmatprep.subr.mxu0 0.0
          %495 = vmatpush1.msra.mxu0 0.0
          %496 = vmatprep.subr.mxu0 0.0
          %497 = vmatpush1.msra.mxu0 0.0
          %498 = vmatprep.mubr.f32.mxu0 0.0
          %499 = vmatmul.mubr.f32.gmra.mrb[0].mxu0 %v429
          %v500 = vpop.f32.mrb[0].mxu0
          %v501 = vadd.f32 0.0, %v500
          %v502 = vpop.f32.mrb[0].mxu0
          %503 = vmatprep.mubr.f32.mxu0 0.0
          %504 = vmatmul.mubr.f32.gmra.mrb[0].mxu0 %v432
          %v505 = vpop.f32.mrb[0].mxu0
          %v506 = vadd.f32 0.0, %v505
          %v507 = vpop.f32.mrb[0].mxu0
          %508 = vdwg.mxu0
          %509 = vst [vmem:[%s242] sm:$0xff] %v501
          %510 = vst [vmem:[%s242 + $0x8] sm:$0xff] %v506
        $region48: #{tpu_custom_call.1} parent=35 // pred_fallthru
          _
        %s511 = sand.u32 %s137, 1
        %s512 = scalar_lea.sflag [#allocation6], %s511
        %s513 = sand.u32 %s137, 1
        %s514 = smul.addr %s513, 16
        %s515 = scalar_lea.vmem [#allocation7], %s514
        // Predicated region
        $region49: #{tpu_custom_call.1} parent=35 // pred_check
          %p516 = pneg %p147
        $region50: #{tpu_custom_call.1} parent=35 // pred_check_branch
          %518 = sbr.rel (%p516) target = $region52
        $region51: #{tpu_custom_call.1} parent=35 // pred_region
          %s520 = ssub.s32 256, 256
          %521 = vsyncadd %s512, %s520
          %s522 = smul.addr %s25, 128
          %s523 = scalar_lea.hbm %s4, %s522
          %s524 = sshll.u32 %s515, 4
          %s525 = int_to_ptr.vmem [resolvable:$true] %s524
          %530 = dma.vmem_to_hbm [thread:$0]  %s525, 256, %s523, %s512, 128, 256, 8
        $region52: #{tpu_custom_call.1} parent=35 // pred_fallthru
          _
      $region36: #{tpu_custom_call.1} parent=5 // pred_fallthru
        _
      %p531 = scmp.le.s32.totalorder 2, %s16
      // Predicated region
      $region53: #{tpu_custom_call.1} parent=5 // pred_check
        %p532 = pneg %p531
      $region54: #{tpu_custom_call.1} parent=5 // pred_check_branch
        %534 = sbr.rel (%p532) target = $region56
      $region55: #{tpu_custom_call.1} parent=5 // pred_region
        %s535 = ssub.s32 %s16, 2
        // Predicated region
        $region57: #{tpu_custom_call.1} parent=55 // pred_check
          %p536 = pneg %p153
        $region58: #{tpu_custom_call.1} parent=55 // pred_check_branch
          %538 = sbr.rel (%p536) target = $region60
        $region59: #{tpu_custom_call.1} parent=55 // pred_region
          %s539 = sand.u32 %s138, 1
          %s540 = scalar_lea.sflag [#allocation6], %s539
          %s541 = sand.u32 %s138, 1
          %s542 = smul.addr %s541, 16
          %s543 = scalar_lea.vmem [#allocation7], %s542
          %544 = dma.done %s540, 256
        $region60: #{tpu_custom_call.1} parent=55 // pred_fallthru
          _
      $region56: #{tpu_custom_call.1} parent=5 // pred_fallthru
        _
    $region6: #{tpu_custom_call.1} parent=1 // loop_footer
      %s20 = sadd.s32 1, %s16
    $region7: #{tpu_custom_call.1} parent=1 // loop_footer_branch
      %15 = sbr.rel target = $region3
    $region8: #{tpu_custom_call.1} parent=1 // loop_exit
      _
    %545 = vsyncpa [#allocation5], 1
    %s546 = scalar_lea.sflag [#allocation5], 1
    %547 = vsyncpa %s546, 1
    %548 = vsyncpa [#allocation6], 1
    %s549 = scalar_lea.sflag [#allocation6], 1
    %550 = vsyncpa %s549, 1

</llo_original>
